<compile_context>
chip_gen: v6e
topology: v6e:2x2x1
jax: 0.10.0
libtpu: 0.0.40
codegen_flags: <defaults>
</compile_context>

<pallas_src>
import functools

import jax
import jax.numpy as jnp
from jax.experimental import pallas as pl
from jax.experimental.pallas import tpu as pltpu

# Module constants (from the PyTorch spec).
H1 = 128     # fc1_s / fc1_a output width (per branch)
H2 = 84      # fc2_s / fc2_a output width (per branch)
CCAT = 10    # concatenation_dim (per branch)
C1 = 32      # fc1_c output width
C2 = 16      # fc2_c output width
LN = 2 * H1  # lane width of the packed slabs (256)


def _round_up(n, m):
    return ((n + m - 1) // m) * m


def _layout(in_dim):
    """Row offsets of each weight section inside the packed weight slab.

    Every section starts on a 16-row boundary and has a 16-multiple row count,
    so all in-kernel static slices are sublane-tile aligned for BOTH f32
    (8-row tiles) and bf16 (16-row tiles) slabs.
    """
    w1 = 0
    w2 = _round_up(in_dim, 16)       # layer-1 rows padded with zeros
    w31 = w2 + 2 * H1                # layer-2 block-diagonal: 256 rows
    wc2 = w31 + 2 * H1               # fused fc3_*+fc1_c: 256 rows
    nrows = wc2 + H1                 # fc2_c: K padded to 128 rows
    return {"w1": w1, "w2": w2, "w31": w31, "wc2": wc2, "nrows": nrows}


def _is_v5e():
    """Best-effort chip detection for the layer-2 split default."""
    try:
        kind = jax.devices()[0].device_kind.lower()
    except Exception:
        return False
    return ("v5 lite" in kind) or ("v5e" in kind) or ("v5lite" in kind)


def _choose_bb(batch, block_batch):
    """Batch tile: multiple of 8 sublanes; ensure >=2 grid steps if possible.

    On v7x the 'parallel' batch axis is the only way both TensorCores engage;
    forcing a second grid step costs only ~0.35us on single-TC chips.
    """
    bb = _round_up(min(block_batch, batch), 8)
    if batch > 8 and pl.cdiv(batch, bb) < 2:
        bb = _round_up(pl.cdiv(batch, 2), 8)
    return max(bb, 8)


def _vmem_estimate_bytes(bb, k1, w_slab, b_slab):
    """Rough VMEM footprint: double-buffered I/O tiles + param slabs + temps."""
    lane = lambda n: _round_up(max(int(n), 1), 128)
    io = 2 * bb * lane(k1) * 4 + 2 * bb * lane(1) * 4       # sa / out tiles
    params = 2 * (w_slab.size * w_slab.dtype.itemsize
                  + b_slab.size * b_slab.dtype.itemsize)
    inter = bb * (2 * LN + 2 * H1) * 4                      # h1, h2, c1, c2 (f32)
    return int(io + params + 2 * inter)                     # 2x margin on temps


# --------------------------------------------------------------------------
# Kernel
# --------------------------------------------------------------------------
def _critic_kernel(lo, split_l2, sa_ref, w_ref, b_ref, out_ref):
    relu = lambda x: jnp.maximum(x, 0.0)
    dot = functools.partial(jnp.dot, preferred_element_type=jnp.float32)
    wdt = w_ref.dtype                 # f32 or bf16 weight slab; biases stay f32

    w2, w31, wc2 = lo["w2"], lo["w31"], lo["wc2"]

    # Layer 1 (fc1_s | fc1_a): one matmul on the packed state||action operand.
    # State rows feed lanes 0:128, action rows feed lanes 128:256; the padded
    # K rows of the slab are zero.
    sa = sa_ref[...].astype(wdt)                                   # (bb, K1)
    h1 = relu(dot(sa, w_ref[0:w2, :]) + b_ref[0:1, :])             # (bb, 256) f32

    if split_l2:
        # v5e-friendly: two 128-wide per-branch matmuls (skip the all-zero
        # off-diagonal 128x128 weight tiles of the fused form).
        h1s = h1[:, 0:H1].astype(wdt)
        h1a = h1[:, H1:2 * H1].astype(wdt)
        h2s = relu(dot(h1s, w_ref[w2:w2 + H1, 0:H1]) + b_ref[1:2, 0:H1])
        h2a = relu(dot(h1a, w_ref[w2 + H1:w2 + 2 * H1, H1:2 * H1])
                   + b_ref[1:2, H1:2 * H1])
        # fc3_s / fc3_a / fc1_c fused (no ReLU between them in torch), split
        # over the two 128-row halves of W31.
        c1 = relu(dot(h2s.astype(wdt), w_ref[w31:w31 + H1, 0:H1])
                  + dot(h2a.astype(wdt), w_ref[w31 + H1:w31 + 2 * H1, 0:H1])
                  + b_ref[2:3, 0:H1])                              # (bb, 128)
    else:
        # fc2_s / fc2_a fused as one block-diagonal 256x256 matmul (v6e/v7x).
        h2 = relu(dot(h1.astype(wdt), w_ref[w2:w2 + 2 * H1, :]) + b_ref[1:2, :])
        # fc3_s / fc3_a / fc1_c fused: W31 = blockdiag(ws3, wa3) @ wc1 exactly.
        c1 = relu(dot(h2.astype(wdt), w_ref[w31:w31 + 2 * H1, 0:H1])
                  + b_ref[2:3, 0:H1])                              # (bb, 128)

    # fc2_c (padding lanes/rows of the slab are zero, so they contribute 0).
    c2 = relu(dot(c1.astype(wdt), w_ref[wc2:wc2 + H1, 0:H1])
              + b_ref[3:4, 0:H1])                                  # (bb, 128)

    # fc3_c (16 -> 1) as a VPU multiply + cross-lane reduce (lanes 16:128 of
    # the weight row are zero).
    out = jnp.sum(c2 * b_ref[4:5, 0:H1], axis=-1, keepdims=True)
    out = out + b_ref[5:6, 0:1]
    # NOTE: output block is 1-lane wide (masked stores); output bytes are tiny
    # (4 B/row) so the lane-dense-output micro-opt is intentionally skipped.
    out_ref[...] = out.astype(out_ref.dtype)


# --------------------------------------------------------------------------
# Wrapper
# --------------------------------------------------------------------------
def critic_forward(state, action, w_slab, b_slab, *,
                   block_batch=1024, split_layer2=None):
    """Fused Critic forward: out[b, 0] = critic(state[b], action[b])."""
    batch, stat_dim = state.shape
    batch_a, action_dim = action.shape
    assert batch_a == batch
    in_dim = stat_dim + action_dim
    lo = _layout(in_dim)
    k1 = lo["w2"]                     # K of layer 1 after zero padding
    assert w_slab.shape == (lo["nrows"], LN), w_slab.shape
    assert b_slab.shape == (8, LN) and b_slab.dtype == jnp.float32, b_slab.shape

    if split_layer2 is None:
        split_layer2 = _is_v5e()

    # Pack (and K-pad) state||action into one operand: layer 1 becomes a
    # single matmul and the kernel keeps a single streaming input / DMA
    # stream.  Single cheap XLA op; no batch-dimension pad copy.
    parts = [state.astype(jnp.float32), action.astype(jnp.float32)]
    if k1 > in_dim:
        parts.append(jnp.zeros((batch, k1 - in_dim), jnp.float32))
    sa = jnp.concatenate(parts, axis=1)                      # (batch, k1)

    bb = _choose_bb(batch, block_batch)
    grid = (pl.cdiv(batch, bb),)      # ragged tail handled by boundary masking

    compiler_kwargs = dict(dimension_semantics=("parallel",))
    est = _vmem_estimate_bytes(bb, k1, w_slab, b_slab)
    if est > (12 << 20):
        # Only needed when the batch tile is pushed large; keep well under
        # v7x's 64 MiB physical VMEM.
        compiler_kwargs["vmem_limit_bytes"] = int(min(max(est, 16 << 20), 56 << 20))

    kernel = functools.partial(_critic_kernel, lo, bool(split_layer2))
    out = pl.pallas_call(
        kernel,
        out_shape=jax.ShapeDtypeStruct((batch, 1), jnp.float32),
        grid_spec=pltpu.PrefetchScalarGridSpec(
            num_scalar_prefetch=0,
            grid=grid,
            in_specs=[
                # Streaming packed-activation tile.
                pl.BlockSpec((bb, k1), lambda i: (i, 0)),
                # VMEM-resident parameter slabs (constant block index, so the
                # pipeline fetches them once and skips re-DMA).
                pl.BlockSpec(w_slab.shape, lambda i: (0, 0)),
                pl.BlockSpec(b_slab.shape, lambda i: (0, 0)),
            ],
            out_specs=pl.BlockSpec((bb, 1), lambda i: (i, 0)),
        ),
        compiler_params=pltpu.CompilerParams(**compiler_kwargs),
    )(sa, w_slab, b_slab)
    return out


# --------------------------------------------------------------------------
# Parameters
# --------------------------------------------------------------------------
def init_critic_params(key, stat_dim, action_dim, concat_dim=CCAT):
    """Deterministic init mimicking nn.Linear's U(-1/sqrt(fan_in), +1/sqrt(fan_in))."""
    def linear(key, fan_in, fan_out):
        kw, kb = jax.random.split(key)
        bound = 1.0 / jnp.sqrt(jnp.float32(fan_in))
        w = jax.random.uniform(kw, (fan_in, fan_out), jnp.float32, -bound, bound)
        b = jax.random.uniform(kb, (fan_out,), jnp.float32, -bound, bound)
        return w, b

    keys = jax.random.split(key, 9)
    ws1, bs1 = linear(keys[0], stat_dim, H1)
    ws2, bs2 = linear(keys[1], H1, H2)
    ws3, bs3 = linear(keys[2], H2, concat_dim)
    wa1, ba1 = linear(keys[3], action_dim, H1)
    wa2, ba2 = linear(keys[4], H1, H2)
    wa3, ba3 = linear(keys[5], H2, concat_dim)
    wc1, bc1 = linear(keys[6], concat_dim * 2, C1)
    wc2, bc2 = linear(keys[7], C1, C2)
    wc3, bc3 = linear(keys[8], C2, 1)
    return {"ws1": ws1, "bs1": bs1, "ws2": ws2, "bs2": bs2,
            "ws3": ws3, "bs3": bs3,
            "wa1": wa1, "ba1": ba1, "wa2": wa2, "ba2": ba2,
            "wa3": wa3, "ba3": ba3,
            "wc1": wc1, "bc1": bc1, "wc2": wc2, "bc2": bc2,
            "wc3": wc3, "bc3": bc3}


def pack_critic_params(p, stat_dim, action_dim, dtype=jnp.float32):
    """Pack all parameters into two lane-padded slabs (do this once).

    dtype=jnp.bfloat16 gives the bf16 weight path (f32 accumulation in-kernel,
    looser tolerance); biases always stay f32.
    """
    in_dim = stat_dim + action_dim
    lo = _layout(in_dim)
    W = jnp.zeros((lo["nrows"], LN), jnp.float32)

    # Layer 1 on the packed state||action input: state rows -> lanes 0:128,
    # action rows -> lanes 128:256; rows in_dim:w2 stay zero (K padding).
    W = W.at[0:stat_dim, 0:H1].set(p["ws1"])
    W = W.at[stat_dim:in_dim, H1:2 * H1].set(p["wa1"])
    # Layer 2: block-diagonal, each branch's 84 outputs zero-padded to 128 lanes.
    W = W.at[lo["w2"]:lo["w2"] + H1, 0:H2].set(p["ws2"])
    W = W.at[lo["w2"] + H1:lo["w2"] + 2 * H1, H1:H1 + H2].set(p["wa2"])
    # Layer 3 + fc1_c fused (exact fold: no nonlinearity between them).
    w3bd = jnp.zeros((2 * H1, 2 * CCAT), jnp.float32)
    w3bd = w3bd.at[0:H2, 0:CCAT].set(p["ws3"])
    w3bd = w3bd.at[H1:H1 + H2, CCAT:2 * CCAT].set(p["wa3"])
    w31 = w3bd @ p["wc1"]                                    # (256, 32), f32 fold
    W = W.at[lo["w31"]:lo["w31"] + 2 * H1, 0:C1].set(w31)
    # fc2_c, K padded to 128 rows / N padded to 128 lanes with zeros.
    W = W.at[lo["wc2"]:lo["wc2"] + C1, 0:C2].set(p["wc2"])

    B = jnp.zeros((8, LN), jnp.float32)
    B = B.at[0, 0:H1].set(p["bs1"]).at[0, H1:2 * H1].set(p["ba1"])
    B = B.at[1, 0:H2].set(p["bs2"]).at[1, H1:H1 + H2].set(p["ba2"])
    b3cat = jnp.concatenate([p["bs3"], p["ba3"]])            # (20,)
    b31 = b3cat @ p["wc1"] + p["bc1"]                        # (32,)
    B = B.at[2, 0:C1].set(b31)
    B = B.at[3, 0:C2].set(p["bc2"])
    B = B.at[4, 0:C2].set(p["wc3"][:, 0])                    # fc3_c weight row
    B = B.at[5, 0].set(p["bc3"][0])                          # fc3_c bias

    # The final VPU reduce relies on padding lanes/rows being exactly zero;
    # assert it so future packer edits cannot silently corrupt the output.
    assert bool(jnp.all(B[4, C2:] == 0.0))
    assert bool(jnp.all(B[6:, :] == 0.0))
    assert bool(jnp.all(W[in_dim:lo["w2"], :] == 0.0))

    return W.astype(dtype), B


def critic_reference(state, action, p):
    """Pure-JAX f32 reference mirroring the PyTorch forward exactly."""
    relu = lambda x: jnp.maximum(x, 0.0)
    s = relu(state @ p["ws1"] + p["bs1"])
    s = relu(s @ p["ws2"] + p["bs2"])
    s = s @ p["ws3"] + p["bs3"]
    a = relu(action @ p["wa1"] + p["ba1"])
    a = relu(a @ p["wa2"] + p["ba2"])
    a = a @ p["wa3"] + p["ba3"]
    c = jnp.concatenate([s, a], axis=1)
    c = relu(c @ p["wc1"] + p["bc1"])
    c = relu(c @ p["wc2"] + p["bc2"])
    return c @ p["wc3"] + p["bc3"]


# TODO(synk): the Adam optimizer / MSELoss members of the torch module are
# training-time constructs with no forward-pass equivalent; not translated.

if __name__ == "__main__":
    STAT_DIM, ACTION_DIM = 12, 6

    key = jax.random.PRNGKey(0)
    k_params, k_data = jax.random.split(key)

    params = init_critic_params(k_params, STAT_DIM, ACTION_DIM)
    w_f32, b_f32 = pack_critic_params(params, STAT_DIM, ACTION_DIM)
    w_bf16, b_bf16 = pack_critic_params(params, STAT_DIM, ACTION_DIM,
                                        dtype=jnp.bfloat16)
    jax.block_until_ready((w_f32, b_f32, w_bf16, b_bf16))

    # (batch, block_batch, split_layer2): exercises a block-divisible batch,
    # a ragged batch (boundary masking, no pad copy), both the fused and the
    # v5e-style split layer-2 paths, and the auto tile/grid selection.
    cases = [
        (96, 32, False),
        (50, 32, True),
        (300, 1024, None),
    ]
    for batch, blk, split in cases:
        ks, ka = jax.random.split(jax.random.fold_in(k_data, batch))
        state = jax.random.normal(ks, (batch, STAT_DIM), jnp.float32)
        action = jax.random.normal(ka, (batch, ACTION_DIM), jnp.float32)

        out = critic_forward(state, action, w_f32, b_f32,
                             block_batch=blk, split_layer2=split)
        out = jax.block_until_ready(out)

        ref = critic_reference(state, action, params)
        assert out.shape == (batch, 1), out.shape
        err = float(jnp.max(jnp.abs(out - ref)))
        assert jnp.allclose(out, ref, atol=2e-4, rtol=2e-4), err

    # Optional bf16-weight path (f32 accumulation): looser tolerance.
    batch = 50
    ks, ka = jax.random.split(jax.random.fold_in(k_data, batch))
    state = jax.random.normal(ks, (batch, STAT_DIM), jnp.float32)
    action = jax.random.normal(ka, (batch, ACTION_DIM), jnp.float32)
    out_bf = jax.block_until_ready(
        critic_forward(state, action, w_bf16, b_bf16, block_batch=32))
    ref = critic_reference(state, action, params)
    assert jnp.allclose(out_bf, ref, atol=5e-2, rtol=5e-2)

    print("KERNEL_OK")
</pallas_src>

<mosaic_0001>
module attributes {stable_mosaic.version = 11 : i64} {
  func.func @_critic_kernel(%arg0: i32, %arg1: memref<32x32xf32, #tpu.memory_space<vmem>>, %arg2: memref<672x256xf32, #tpu.memory_space<vmem>>, %arg3: memref<8x256xf32, #tpu.memory_space<vmem>>, %arg4: memref<32x1xf32, #tpu.memory_space<vmem>>) attributes {dimension_semantics = [#tpu.dimension_semantics<parallel>], iteration_bounds = array<i64: 3>, scalar_prefetch = 0 : i64, scratch_operands = 0 : i64, tpu.core_type = #tpu.core_type<tc>, window_params = [{transform_indices = @transform_0, window_bounds = array<i64: 32, 32>}, {pipeline_mode = #tpu.pipeline_mode<synchronous>, transform_indices = @transform_1, window_bounds = array<i64: 672, 256>}, {pipeline_mode = #tpu.pipeline_mode<synchronous>, transform_indices = @transform_2, window_bounds = array<i64: 8, 256>}, {transform_indices = @transform_3, window_bounds = array<i64: 32, 1>}]} {
    %c0 = arith.constant 0 : index
    %c0_0 = arith.constant 0 : index
    %0 = vector.load %arg1[%c0, %c0_0] : memref<32x32xf32, #tpu.memory_space<vmem>>, vector<32x32xf32>
    %c0_1 = arith.constant 0 : index
    %c0_2 = arith.constant 0 : index
    %1 = vector.load %arg2[%c0_1, %c0_2] : memref<672x256xf32, #tpu.memory_space<vmem>>, vector<32x256xf32>
    %cst = arith.constant dense<0.000000e+00> : vector<32x256xf32>
    %2 = tpu.matmul %0, %1, %cst {dimension_numbers = #tpu.dot_dimension_numbers<[1], [0], [0], [1], [0, 0, 1, 1], [], []>} : vector<32x32xf32>, vector<32x256xf32>, vector<32x256xf32> -> vector<32x256xf32>
    %c0_3 = arith.constant 0 : index
    %c0_4 = arith.constant 0 : index
    %3 = vector.load %arg3[%c0_3, %c0_4] : memref<8x256xf32, #tpu.memory_space<vmem>>, vector<1x256xf32>
    %4 = vector.broadcast %3 : vector<1x256xf32> to vector<32x256xf32>
    %5 = arith.addf %2, %4 : vector<32x256xf32>
    %cst_5 = arith.constant 0.000000e+00 : f32
    %6 = vector.broadcast %cst_5 : f32 to vector<32x256xf32>
    %7 = arith.maximumf %5, %6 : vector<32x256xf32>
    %c32 = arith.constant 32 : index
    %c0_6 = arith.constant 0 : index
    %8 = vector.load %arg2[%c32, %c0_6] : memref<672x256xf32, #tpu.memory_space<vmem>>, vector<256x256xf32>
    %cst_7 = arith.constant dense<0.000000e+00> : vector<32x256xf32>
    %9 = tpu.matmul %7, %8, %cst_7 {dimension_numbers = #tpu.dot_dimension_numbers<[1], [0], [0], [1], [0, 0, 1, 1], [], []>} : vector<32x256xf32>, vector<256x256xf32>, vector<32x256xf32> -> vector<32x256xf32>
    %c1 = arith.constant 1 : index
    %c0_8 = arith.constant 0 : index
    %10 = vector.load %arg3[%c1, %c0_8] : memref<8x256xf32, #tpu.memory_space<vmem>>, vector<1x256xf32>
    %11 = vector.broadcast %10 : vector<1x256xf32> to vector<32x256xf32>
    %12 = arith.addf %9, %11 : vector<32x256xf32>
    %cst_9 = arith.constant 0.000000e+00 : f32
    %13 = vector.broadcast %cst_9 : f32 to vector<32x256xf32>
    %14 = arith.maximumf %12, %13 : vector<32x256xf32>
    %c288 = arith.constant 288 : index
    %c0_10 = arith.constant 0 : index
    %15 = vector.load %arg2[%c288, %c0_10] : memref<672x256xf32, #tpu.memory_space<vmem>>, vector<256x128xf32>
    %cst_11 = arith.constant dense<0.000000e+00> : vector<32x128xf32>
    %16 = tpu.matmul %14, %15, %cst_11 {dimension_numbers = #tpu.dot_dimension_numbers<[1], [0], [0], [1], [0, 0, 1, 1], [], []>} : vector<32x256xf32>, vector<256x128xf32>, vector<32x128xf32> -> vector<32x128xf32>
    %c2 = arith.constant 2 : index
    %c0_12 = arith.constant 0 : index
    %17 = vector.load %arg3[%c2, %c0_12] : memref<8x256xf32, #tpu.memory_space<vmem>>, vector<1x128xf32>
    %18 = vector.broadcast %17 : vector<1x128xf32> to vector<32x128xf32>
    %19 = arith.addf %16, %18 : vector<32x128xf32>
    %cst_13 = arith.constant 0.000000e+00 : f32
    %20 = vector.broadcast %cst_13 : f32 to vector<32x128xf32>
    %21 = arith.maximumf %19, %20 : vector<32x128xf32>
    %c544 = arith.constant 544 : index
    %c0_14 = arith.constant 0 : index
    %22 = vector.load %arg2[%c544, %c0_14] : memref<672x256xf32, #tpu.memory_space<vmem>>, vector<128x128xf32>
    %cst_15 = arith.constant dense<0.000000e+00> : vector<32x128xf32>
    %23 = tpu.matmul %21, %22, %cst_15 {dimension_numbers = #tpu.dot_dimension_numbers<[1], [0], [0], [1], [0, 0, 1, 1], [], []>} : vector<32x128xf32>, vector<128x128xf32>, vector<32x128xf32> -> vector<32x128xf32>
    %c3 = arith.constant 3 : index
    %c0_16 = arith.constant 0 : index
    %24 = vector.load %arg3[%c3, %c0_16] : memref<8x256xf32, #tpu.memory_space<vmem>>, vector<1x128xf32>
    %25 = vector.broadcast %24 : vector<1x128xf32> to vector<32x128xf32>
    %26 = arith.addf %23, %25 : vector<32x128xf32>
    %cst_17 = arith.constant 0.000000e+00 : f32
    %27 = vector.broadcast %cst_17 : f32 to vector<32x128xf32>
    %28 = arith.maximumf %26, %27 : vector<32x128xf32>
    %c4 = arith.constant 4 : index
    %c0_18 = arith.constant 0 : index
    %29 = vector.load %arg3[%c4, %c0_18] : memref<8x256xf32, #tpu.memory_space<vmem>>, vector<1x128xf32>
    %30 = vector.broadcast %29 : vector<1x128xf32> to vector<32x128xf32>
    %31 = arith.mulf %28, %30 : vector<32x128xf32>
    %cst_19 = arith.constant dense<0.000000e+00> : vector<32xf32>
    %32 = vector.multi_reduction <add>, %31, %cst_19 [1] : vector<32x128xf32> to vector<32xf32>
    %33 = vector.shape_cast %32 : vector<32xf32> to vector<32x1xf32>
    %c5 = arith.constant 5 : index
    %c0_20 = arith.constant 0 : index
    %34 = vector.load %arg3[%c5, %c0_20] : memref<8x256xf32, #tpu.memory_space<vmem>>, vector<1x1xf32>
    %35 = vector.broadcast %34 : vector<1x1xf32> to vector<32x1xf32>
    %36 = arith.addf %33, %35 : vector<32x1xf32>
    %c0_21 = arith.constant 0 : index
    %c0_22 = arith.constant 0 : index
    %37 = vector.load %arg4[%c0_21, %c0_22] : memref<32x1xf32, #tpu.memory_space<vmem>>, vector<32x1xf32>
    tpu.vector_store %arg4[%c0_21, %c0_22], %36 {strides = array<i32>} : memref<32x1xf32, #tpu.memory_space<vmem>>, vector<32x1xf32>,
    return
  }
  func.func @transform_0(%arg0: i32) -> (i32, i32) {
    %c0_i32 = arith.constant 0 : i32
    %c0_i32_0 = arith.constant 0 : i32
    return %arg0, %c0_i32 : i32, i32
  }
  func.func @transform_1(%arg0: i32) -> (i32, i32) {
    %c0_i32 = arith.constant 0 : i32
    %c0_i32_0 = arith.constant 0 : i32
    %c0_i32_1 = arith.constant 0 : i32
    return %c0_i32, %c0_i32_0 : i32, i32
  }
  func.func @transform_2(%arg0: i32) -> (i32, i32) {
    %c0_i32 = arith.constant 0 : i32
    %c0_i32_0 = arith.constant 0 : i32
    %c0_i32_1 = arith.constant 0 : i32
    return %c0_i32, %c0_i32_0 : i32, i32
  }
  func.func @transform_3(%arg0: i32) -> (i32, i32) {
    %c0_i32 = arith.constant 0 : i32
    %c0_i32_0 = arith.constant 0 : i32
    return %arg0, %c0_i32 : i32, i32
  }
}

</mosaic_0001>

<llo_original>
// kernel: tpu_custom_call.1
$region0: #{tpu_custom_call.1}
  #allocation0 [shape = 'u32[]', space=smem, size = 0x4, offset = 0x4, fixed_abs, tag = 'smem constant byte address 0x4 - core index']
  #allocation1 [shape = 'u32[144,128]{1,0:T(1,128)}', space=vmem, size = 0x12000, scoped, tag = 'internal scratch']
  %s0 = inlined_call_operand.vmem [shape: f32[96,32], index: 0, kind: input, shape index: {}]
  %s1 = inlined_call_operand.hbm [shape: f32[672,256], index: 1, kind: input, shape index: {}]
  %s2 = inlined_call_operand.vmem [shape: f32[8,256], index: 2, kind: input, shape index: {}]
  %s3 = inlined_call_operand.vmem [shape: f32[96,1], index: 3, kind: output, shape index: {}]
  %s4 = sld [smem:[#allocation0]]
  $region49: #{tpu_custom_call.1} parent=0
    _
  %s6 = ssub.s32 1, %s4
  %s7 = scalar_select 0, %s6, %s4
  $region1: #{tpu_custom_call.1} parent=0
    #allocation2 [shape = 'u8[688128]{0}', space=vmem, size = 0xa8000, scoped, tag = 'input window, operand 1, single buffered']
    #allocation3 [shape = 's32[2]{0}', space=sflag, size = 0x8, scoped, tag = 'scoped memory for tpu_custom_call.1']
    %8 = vsyncpa [#allocation3], 0
    loop: start=0, step=1, limit=5
    $region2: #{tpu_custom_call.1} parent=1 // loop_pre_header
      _
    $region3: #{tpu_custom_call.1} parent=1 // loop_header
      %s10 = sphi 0, %s14
      %p11 = scmp.ge.s32.totalorder %s10, 5
      %s20 = sphi 0, %s22
      %s23 = sphi 0, %s20
      %s24 = sphi 0, %s23
      %s40 = sphi 0, %s24
      %s44 = sphi 0, %s44
      %s46 = sphi 0, %s44
      %s47 = sphi 0, %s46
      %s61 = sphi 0, %s47
      %s65 = sphi 0, %s65
      %s67 = sphi 0, %s65
      %s68 = sphi 0, %s67
      %s82 = sphi 0, %s68
      %s88 = sphi 0, %s90
      %s91 = sphi 0, %s88
      %s92 = sphi 0, %s91
      %s108 = sphi 0, %s92
    $region4: #{tpu_custom_call.1} parent=1 // loop_header_branch
      %13 = sbr.rel (%p11) target = $region8
    $region5: #{tpu_custom_call.1} parent=1 // loop_body
      %s15 = ssub.s32 %s10, 1
      %s16 = ssub.s32 %s10, 2
      %s17 = sadd.s32 %s10, 1
      %s18 = ssub.s32 %s10, %s17
      %p19 = scmp.eq.s32.totalorder %s18, 0
      %s21 = sadd.s32 %s20, 1
      %s22 = scalar_select %p19, %s20, %s21
      %p25 = pneg %p19
      %p26 = scmp.eq.s32.totalorder %s10, 2
      %p27 = por %p25, %p26
      %p28 = scmp.ne.s32.totalorder %s20, %s23
      %p29 = scmp.eq.s32.totalorder %s10, 0
      %p30 = por %p28, %p29
      %p31 = scmp.ne.s32.totalorder %s20, %s23
      %p32 = scmp.eq.s32.totalorder %s15, 2
      %p33 = por %p31, %p32
      %p34 = scmp.ne.s32.totalorder %s23, %s24
      %p35 = scmp.eq.s32.totalorder %s15, 0
      %p36 = por %p34, %p35
      %p37 = scmp.ne.s32.totalorder %s23, %s24
      %p38 = scmp.eq.s32.totalorder %s16, 2
      %p39 = por %p37, %p38
      %p41 = scmp.ne.s32.totalorder %s24, %s40
      %p42 = scmp.eq.s32.totalorder %s16, 0
      %p43 = por %p41, %p42
      %s45 = sadd.s32 %s44, 1
      %p48 = scmp.eq.s32.totalorder %s10, 2
      %p49 = scmp.ne.s32.totalorder %s44, %s46
      %p50 = scmp.eq.s32.totalorder %s10, 0
      %p51 = por %p49, %p50
      %p52 = scmp.ne.s32.totalorder %s44, %s46
      %p53 = scmp.eq.s32.totalorder %s15, 2
      %p54 = por %p52, %p53
      %p55 = scmp.ne.s32.totalorder %s46, %s47
      %p56 = scmp.eq.s32.totalorder %s15, 0
      %p57 = por %p55, %p56
      %p58 = scmp.ne.s32.totalorder %s46, %s47
      %p59 = scmp.eq.s32.totalorder %s16, 2
      %p60 = por %p58, %p59
      %p62 = scmp.ne.s32.totalorder %s47, %s61
      %p63 = scmp.eq.s32.totalorder %s16, 0
      %p64 = por %p62, %p63
      %s66 = sadd.s32 %s65, 1
      %p69 = scmp.eq.s32.totalorder %s10, 2
      %p70 = scmp.ne.s32.totalorder %s65, %s67
      %p71 = scmp.eq.s32.totalorder %s10, 0
      %p72 = por %p70, %p71
      %p73 = scmp.ne.s32.totalorder %s65, %s67
      %p74 = scmp.eq.s32.totalorder %s15, 2
      %p75 = por %p73, %p74
      %p76 = scmp.ne.s32.totalorder %s67, %s68
      %p77 = scmp.eq.s32.totalorder %s15, 0
      %p78 = por %p76, %p77
      %p79 = scmp.ne.s32.totalorder %s67, %s68
      %p80 = scmp.eq.s32.totalorder %s16, 2
      %p81 = por %p79, %p80
      %p83 = scmp.ne.s32.totalorder %s68, %s82
      %p84 = scmp.eq.s32.totalorder %s16, 0
      %p85 = por %p83, %p84
      %s86 = ssub.s32 %s10, %s17
      %p87 = scmp.eq.s32.totalorder %s86, 0
      %s89 = sadd.s32 %s88, 1
      %s90 = scalar_select %p87, %s88, %s89
      %p93 = pneg %p87
      %p94 = scmp.eq.s32.totalorder %s10, 2
      %p95 = por %p93, %p94
      %p96 = scmp.ne.s32.totalorder %s88, %s91
      %p97 = scmp.eq.s32.totalorder %s10, 0
      %p98 = por %p96, %p97
      %p99 = scmp.ne.s32.totalorder %s88, %s91
      %p100 = scmp.eq.s32.totalorder %s15, 2
      %p101 = por %p99, %p100
      %p102 = scmp.ne.s32.totalorder %s91, %s92
      %p103 = scmp.eq.s32.totalorder %s15, 0
      %p104 = por %p102, %p103
      %p105 = scmp.ne.s32.totalorder %s91, %s92
      %p106 = scmp.eq.s32.totalorder %s16, 2
      %p107 = por %p105, %p106
      %p109 = scmp.ne.s32.totalorder %s92, %s108
      %p110 = scmp.eq.s32.totalorder %s16, 0
      %p111 = por %p109, %p110
      %p112 = scmp.le.s32.totalorder 1, %s10
      %p113 = scmp.lt.s32.totalorder %s10, 4
      %p114 = pnand %p112, %p113
      %p115 = pneg %p114
      // Predicated region
      $region9: #{tpu_custom_call.1} parent=5 // pred_check
        _
      $region10: #{tpu_custom_call.1} parent=5 // pred_check_branch
        %117 = sbr.rel (%p114) target = $region12
      $region11: #{tpu_custom_call.1} parent=5 // pred_region
        %s118 = ssub.s32 %s10, 1
        // Predicated region
        $region13: #{tpu_custom_call.1} parent=11 // pred_check
          %p119 = pneg %p57
        $region14: #{tpu_custom_call.1} parent=11 // pred_check_branch
          %121 = sbr.rel (%p119) target = $region16
        $region15: #{tpu_custom_call.1} parent=11 // pred_region
          %s123 = ssub.s32 21504, 21504
          %124 = vsyncadd [#allocation3], %s123
          %s125 = sshll.u32 [#allocation2], 4
          %s126 = int_to_ptr.vmem [resolvable:$true] %s125
          %131 = dma.hbm_to_vmem [thread:$0]  %s1, 21504, %s126, [#allocation3], 256, 256, 16
        $region16: #{tpu_custom_call.1} parent=11 // pred_fallthru
          _
        // Predicated region
        $region17: #{tpu_custom_call.1} parent=11 // pred_check
          %p132 = pneg %p78
        $region18: #{tpu_custom_call.1} parent=11 // pred_check_branch
          %134 = sbr.rel (%p132) target = $region20
        $region19: #{tpu_custom_call.1} parent=11 // pred_region
          _
        $region20: #{tpu_custom_call.1} parent=11 // pred_fallthru
          _
      $region12: #{tpu_custom_call.1} parent=5 // pred_fallthru
        _
      %p135 = scmp.lt.s32.totalorder %s10, 3
      // Predicated region
      $region21: #{tpu_custom_call.1} parent=5 // pred_check
        %p136 = pneg %p135
      $region22: #{tpu_custom_call.1} parent=5 // pred_check_branch
        %138 = sbr.rel (%p136) target = $region24
      $region23: #{tpu_custom_call.1} parent=5 // pred_region
        // Predicated region
        $region25: #{tpu_custom_call.1} parent=23 // pred_check
          %p139 = pneg %p30
        $region26: #{tpu_custom_call.1} parent=23 // pred_check_branch
          %141 = sbr.rel (%p139) target = $region28
        $region27: #{tpu_custom_call.1} parent=23 // pred_region
          %s142 = smul.u32 4, %s10
          %p143 = scmp.lt.s32.totalorder %s142, 11
          %s144 = scalar_select %p143, %s142, 11
          %s145 = smul.addr %s144, 8
          %s146 = scalar_lea.vmem %s0, %s145
          %s147 = smul.u32 4, %s10
        $region28: #{tpu_custom_call.1} parent=23 // pred_fallthru
          _
      $region24: #{tpu_custom_call.1} parent=5 // pred_fallthru
        _
      %p148 = scmp.le.s32.totalorder 1, %s10
      %p149 = scmp.lt.s32.totalorder %s10, 4
      %p150 = pnand %p148, %p149
      %p151 = pneg %p150
      // Predicated region
      $region29: #{tpu_custom_call.1} parent=5 // pred_check
        _
      $region30: #{tpu_custom_call.1} parent=5 // pred_check_branch
        %153 = sbr.rel (%p150) target = $region32
      $region31: #{tpu_custom_call.1} parent=5 // pred_region
        %s154 = ssub.s32 %s10, 1
        // Predicated region
        $region33: #{tpu_custom_call.1} parent=31 // pred_check
          %p155 = pneg %p57
        $region34: #{tpu_custom_call.1} parent=31 // pred_check_branch
          %157 = sbr.rel (%p155) target = $region36
        $region35: #{tpu_custom_call.1} parent=31 // pred_region
          %158 = dma.done [#allocation3], 21504
        $region36: #{tpu_custom_call.1} parent=31 // pred_fallthru
          _
        %s159 = smul.u32 4, %s15
        %p160 = scmp.lt.s32.totalorder %s159, 11
        %s161 = scalar_select %p160, %s159, 11
        %s162 = smul.addr %s161, 8
        %s163 = scalar_lea.vmem %s0, %s162
        %p164 = pneg %p36
        %p165 = pneg %p33
        %p166 = pneg %p57
        %p167 = pneg %p54
        %p168 = pneg %p78
        %p169 = pneg %p75
        %p170 = pneg %p104
        %p171 = pneg %p101
        %s172 = smul.u32 4, %s15
        %p173 = scmp.lt.s32.totalorder %s172, 11
        %s174 = scalar_select %p173, %s172, 11
        %s175 = smul.addr %s174, 8
        %s176 = scalar_lea.vmem %s3, %s175
        %s177 = smul.u32 4, %s15
        %p178 = scmp.lt.s32.totalorder %s177, 11
        %s179 = scalar_select %p178, %s177, 11
        %s180 = smul.addr %s179, 8
        %s181 = scalar_lea.vmem %s0, %s180
        %s182 = smul.u32 4, %s15
        %s183 = smul.u32 4, %s15
        %p184 = scmp.lt.s32.totalorder %s183, 11
        %s185 = scalar_select %p184, %s183, 11
        %s186 = smul.addr %s185, 8
        %s187 = scalar_lea.vmem %s3, %s186
        %s188 = smul.u32 4, %s15
        %v189 = vld [vmem:[%s181] sm:$0xff]
        %v190 = vld [vmem:[%s181 + $0x8] sm:$0xff]
        %v191 = vld [vmem:[%s181 + $0x10] sm:$0xff]
        %v192 = vld [vmem:[%s181 + $0x18] sm:$0xff]
        %v193 = vld [vmem:[#allocation2] sm:$0xff]
        %v194 = vld [vmem:[#allocation2 + $0x8] sm:$0xff]
        %v195 = vld [vmem:[#allocation2 + $0x10] sm:$0xff]
        %v196 = vld [vmem:[#allocation2 + $0x18] sm:$0xff]
        %v197 = vld [vmem:[#allocation2 + $0x20] sm:$0xff]
        %v198 = vld [vmem:[#allocation2 + $0x28] sm:$0xff]
        %v199 = vld [vmem:[#allocation2 + $0x30] sm:$0xff]
        %v200 = vld [vmem:[#allocation2 + $0x38] sm:$0xff]
        %v201 = vld [vmem:[%s2] ss:$8 sm:$0x3]
        %v203 = vlaneseq
        %v204 = vshrl.u32 %v203, 7
        %v205 = vsub.s32 0, %v204
        %v206 = vrot.slane %v201, %v205
        %v207 = vlaneseq
        %v208 = vshrl.u32 %v207, 7
        %v209 = vsub.s32 1, %v208
        %v210 = vrot.slane %v201, %v209
        %vm213 = vcmask 261120
        %v215 = vsel %vm213, %v189, 0
        %v218 = vsel %vm213, %v190, 0
        %v221 = vsel %vm213, %v191, 0
        %v224 = vsel %vm213, %v192, 0
        %226 = vmatprep.subr.mxu0 0.0
        %227 = vmatpush1.msra.mxu0 0.0
        %228 = vmatprep.subr.mxu0 0.0
        %229 = vmatpush1.msra.mxu0 0.0
        %230 = vmatprep.subr.mxu0 0.0
        %231 = vmatpush1.msra.mxu0 0.0
        %232 = vmatprep.subr.mxu0 0.0
        %233 = vmatpush1.msra.mxu0 0.0
        %234 = vmatprep.subr.mxu0 0.0
        %235 = vmatpush1.msra.mxu0 0.0
        %236 = vmatprep.subr.mxu0 0.0
        %237 = vmatpush1.msra.mxu0 0.0
        %238 = vmatprep.subr.mxu0 0.0
        %239 = vmatpush1.msra.mxu0 0.0
        %240 = vmatprep.subr.mxu0 0.0
        %241 = vmatpush1.msra.mxu0 0.0
        %242 = vmatprep.subr.mxu0 0.0
        %243 = vmatpush1.msra.mxu0 0.0
        %244 = vmatprep.subr.mxu0 0.0
        %245 = vmatpush1.msra.mxu0 0.0
        %246 = vmatprep.subr.mxu0 0.0
        %247 = vmatpush1.msra.mxu0 0.0
        %248 = vmatprep.subr.mxu0 0.0
        %249 = vmatpush1.msra.mxu0 0.0
        %250 = vmatprep.subr.mxu0 %v200
        %251 = vmatpush1.msra.mxu0 %v199
        %252 = vmatprep.subr.mxu0 %v198
        %253 = vmatpush1.msra.mxu0 %v197
        %254 = vmatprep.subr.mxu0 %v196
        %255 = vmatpush1.msra.mxu0 %v195
        %256 = vmatprep.subr.mxu0 %v194
        %257 = vmatpush1.msra.mxu0 %v193
        %258 = vmatprep.subr.mxu0 0.0
        %259 = vmatpush2.msra.mxu0 0.0
        %260 = vmatprep.subr.mxu0 0.0
        %261 = vmatpush2.msra.mxu0 0.0
        %262 = vmatprep.subr.mxu0 0.0
        %263 = vmatpush2.msra.mxu0 0.0
        %264 = vmatprep.subr.mxu0 0.0
        %265 = vmatpush2.msra.mxu0 0.0
        %266 = vmatprep.subr.mxu0 0.0
        %267 = vmatpush2.msra.mxu0 0.0
        %268 = vmatprep.subr.mxu0 0.0
        %269 = vmatpush2.msra.mxu0 0.0
        %270 = vmatprep.subr.mxu0 0.0
        %271 = vmatpush2.msra.mxu0 0.0
        %272 = vmatprep.subr.mxu0 0.0
        %273 = vmatpush2.msra.mxu0 0.0
        %274 = vmatprep.subr.mxu0 0.0
        %275 = vmatpush2.msra.mxu0 0.0
        %276 = vmatprep.subr.mxu0 0.0
        %277 = vmatpush2.msra.mxu0 0.0
        %278 = vmatprep.subr.mxu0 0.0
        %279 = vmatpush2.msra.mxu0 0.0
        %280 = vmatprep.subr.mxu0 0.0
        %281 = vmatpush2.msra.mxu0 0.0
        %282 = vmatprep.subr.mxu0 0.0
        %283 = vmatpush2.msra.mxu0 0.0
        %284 = vmatprep.subr.mxu0 0.0
        %285 = vmatpush2.msra.mxu0 0.0
        %286 = vmatprep.subr.mxu0 0.0
        %287 = vmatpush2.msra.mxu0 0.0
        %288 = vmatprep.subr.mxu0 0.0
        %289 = vmatpush2.msra.mxu0 0.0
        %290 = vmatprep.mubr.f32.mxu0 0.0
        %291 = vmatmul.mubr.f32.gmra.mxu0 %v215
        %v292 = vpop.f32.mrf.mxu0
        %v293 = vadd.f32 %v206, %v292
        %v294 = vpop.f32.mrf.mxu0
        %v295 = vadd.f32 %v210, %v294
        %296 = vmatprep.mubr.f32.mxu0 0.0
        %297 = vmatmul.mubr.f32.gmra.mxu0 %v218
        %v298 = vpop.f32.mrf.mxu0
        %v299 = vadd.f32 %v206, %v298
        %v300 = vpop.f32.mrf.mxu0
        %v301 = vadd.f32 %v210, %v300
        %302 = vmatprep.mubr.f32.mxu0 0.0
        %303 = vmatmul.mubr.f32.gmra.mxu0 %v221
        %v304 = vpop.f32.mrf.mxu0
        %v305 = vadd.f32 %v206, %v304
        %v306 = vpop.f32.mrf.mxu0
        %v307 = vadd.f32 %v210, %v306
        %308 = vmatprep.mubr.f32.mxu0 0.0
        %309 = vmatmul.mubr.f32.gmra.mxu0 %v224
        %v310 = vpop.f32.mrf.mxu0
        %v311 = vadd.f32 %v206, %v310
        %v312 = vpop.f32.mrf.mxu0
        %v313 = vadd.f32 %v210, %v312
        %314 = vdwg.mxu0
        %v315 = vmax.f32 %v293, 0.0
        %v316 = vmax.f32 %v295, 0.0
        %v317 = vmax.f32 %v299, 0.0
        %v318 = vmax.f32 %v301, 0.0
        %v319 = vmax.f32 %v305, 0.0
        %v320 = vmax.f32 %v307, 0.0
        %v321 = vmax.f32 %v311, 0.0
        %v322 = vmax.f32 %v313, 0.0
        %v323 = vld [vmem:[#allocation2 + $0x40] sm:$0xff]
        %v324 = vld [vmem:[#allocation2 + $0x48] sm:$0xff]
        %v325 = vld [vmem:[#allocation2 + $0x50] sm:$0xff]
        %v326 = vld [vmem:[#allocation2 + $0x58] sm:$0xff]
        %v327 = vld [vmem:[#allocation2 + $0x60] sm:$0xff]
        %v328 = vld [vmem:[#allocation2 + $0x68] sm:$0xff]
        %v329 = vld [vmem:[#allocation2 + $0x70] sm:$0xff]
        %v330 = vld [vmem:[#allocation2 + $0x78] sm:$0xff]
        %v331 = vld [vmem:[#allocation2 + $0x80] sm:$0xff]
        %v332 = vld [vmem:[#allocation2 + $0x88] sm:$0xff]
        %v333 = vld [vmem:[#allocation2 + $0x90] sm:$0xff]
        %v334 = vld [vmem:[#allocation2 + $0x98] sm:$0xff]
        %v335 = vld [vmem:[#allocation2 + $0xa0] sm:$0xff]
        %v336 = vld [vmem:[#allocation2 + $0xa8] sm:$0xff]
        %v337 = vld [vmem:[#allocation2 + $0xb0] sm:$0xff]
        %v338 = vld [vmem:[#allocation2 + $0xb8] sm:$0xff]
        %v339 = vld [vmem:[#allocation2 + $0xc0] sm:$0xff]
        %v340 = vld [vmem:[#allocation2 + $0xc8] sm:$0xff]
        %v341 = vld [vmem:[#allocation2 + $0xd0] sm:$0xff]
        %v342 = vld [vmem:[#allocation2 + $0xd8] sm:$0xff]
        %v343 = vld [vmem:[#allocation2 + $0xe0] sm:$0xff]
        %v344 = vld [vmem:[#allocation2 + $0xe8] sm:$0xff]
        %v345 = vld [vmem:[#allocation2 + $0xf0] sm:$0xff]
        %v346 = vld [vmem:[#allocation2 + $0xf8] sm:$0xff]
        %v347 = vld [vmem:[#allocation2 + $0x100] sm:$0xff]
        %v348 = vld [vmem:[#allocation2 + $0x108] sm:$0xff]
        %v349 = vld [vmem:[#allocation2 + $0x110] sm:$0xff]
        %v350 = vld [vmem:[#allocation2 + $0x118] sm:$0xff]
        %v351 = vld [vmem:[#allocation2 + $0x120] sm:$0xff]
        %v352 = vld [vmem:[#allocation2 + $0x128] sm:$0xff]
        %v353 = vld [vmem:[#allocation2 + $0x130] sm:$0xff]
        %v354 = vld [vmem:[#allocation2 + $0x138] sm:$0xff]
        %v355 = vld [vmem:[#allocation2 + $0x140] sm:$0xff]
        %v356 = vld [vmem:[#allocation2 + $0x148] sm:$0xff]
        %v357 = vld [vmem:[#allocation2 + $0x150] sm:$0xff]
        %v358 = vld [vmem:[#allocation2 + $0x158] sm:$0xff]
        %v359 = vld [vmem:[#allocation2 + $0x160] sm:$0xff]
        %v360 = vld [vmem:[#allocation2 + $0x168] sm:$0xff]
        %v361 = vld [vmem:[#allocation2 + $0x170] sm:$0xff]
        %v362 = vld [vmem:[#allocation2 + $0x178] sm:$0xff]
        %v363 = vld [vmem:[#allocation2 + $0x180] sm:$0xff]
        %v364 = vld [vmem:[#allocation2 + $0x188] sm:$0xff]
        %v365 = vld [vmem:[#allocation2 + $0x190] sm:$0xff]
        %v366 = vld [vmem:[#allocation2 + $0x198] sm:$0xff]
        %v367 = vld [vmem:[#allocation2 + $0x1a0] sm:$0xff]
        %v368 = vld [vmem:[#allocation2 + $0x1a8] sm:$0xff]
        %v369 = vld [vmem:[#allocation2 + $0x1b0] sm:$0xff]
        %v370 = vld [vmem:[#allocation2 + $0x1b8] sm:$0xff]
        %v371 = vld [vmem:[#allocation2 + $0x1c0] sm:$0xff]
        %v372 = vld [vmem:[#allocation2 + $0x1c8] sm:$0xff]
        %v373 = vld [vmem:[#allocation2 + $0x1d0] sm:$0xff]
        %v374 = vld [vmem:[#allocation2 + $0x1d8] sm:$0xff]
        %v375 = vld [vmem:[#allocation2 + $0x1e0] sm:$0xff]
        %v376 = vld [vmem:[#allocation2 + $0x1e8] sm:$0xff]
        %v377 = vld [vmem:[#allocation2 + $0x1f0] sm:$0xff]
        %v378 = vld [vmem:[#allocation2 + $0x1f8] sm:$0xff]
        %v379 = vld [vmem:[#allocation2 + $0x200] sm:$0xff]
        %v380 = vld [vmem:[#allocation2 + $0x208] sm:$0xff]
        %v381 = vld [vmem:[#allocation2 + $0x210] sm:$0xff]
        %v382 = vld [vmem:[#allocation2 + $0x218] sm:$0xff]
        %v383 = vld [vmem:[#allocation2 + $0x220] sm:$0xff]
        %v384 = vld [vmem:[#allocation2 + $0x228] sm:$0xff]
        %v385 = vld [vmem:[#allocation2 + $0x230] sm:$0xff]
        %v386 = vld [vmem:[#allocation2 + $0x238] sm:$0xff]
        %s387 = scalar_lea.vmem %s2, 1
        %v388 = vld [vmem:[%s387] ss:$8 sm:$0x3]
        %v390 = vlaneseq
        %v391 = vshrl.u32 %v390, 7
        %v392 = vsub.s32 0, %v391
        %v393 = vrot.slane %v388, %v392
        %v394 = vlaneseq
        %v395 = vshrl.u32 %v394, 7
        %v396 = vsub.s32 1, %v395
        %v397 = vrot.slane %v388, %v396
        %400 = vmatprep.subr.mxu0 %v354
        %401 = vmatpush1.msra.mxu0 %v353
        %402 = vmatprep.subr.mxu0 %v352
        %403 = vmatpush1.msra.mxu0 %v351
        %404 = vmatprep.subr.mxu0 %v350
        %405 = vmatpush1.msra.mxu0 %v349
        %406 = vmatprep.subr.mxu0 %v348
        %407 = vmatpush1.msra.mxu0 %v347
        %408 = vmatprep.subr.mxu0 %v346
        %409 = vmatpush1.msra.mxu0 %v345
        %410 = vmatprep.subr.mxu0 %v344
        %411 = vmatpush1.msra.mxu0 %v343
        %412 = vmatprep.subr.mxu0 %v342
        %413 = vmatpush1.msra.mxu0 %v341
        %414 = vmatprep.subr.mxu0 %v340
        %415 = vmatpush1.msra.mxu0 %v339
        %416 = vmatprep.subr.mxu0 %v338
        %417 = vmatpush1.msra.mxu0 %v337
        %418 = vmatprep.subr.mxu0 %v336
        %419 = vmatpush1.msra.mxu0 %v335
        %420 = vmatprep.subr.mxu0 %v334
        %421 = vmatpush1.msra.mxu0 %v333
        %422 = vmatprep.subr.mxu0 %v332
        %423 = vmatpush1.msra.mxu0 %v331
        %424 = vmatprep.subr.mxu0 %v330
        %425 = vmatpush1.msra.mxu0 %v329
        %426 = vmatprep.subr.mxu0 %v328
        %427 = vmatpush1.msra.mxu0 %v327
        %428 = vmatprep.subr.mxu0 %v326
        %429 = vmatpush1.msra.mxu0 %v325
        %430 = vmatprep.subr.mxu0 %v324
        %431 = vmatpush1.msra.mxu0 %v323
        %432 = vmatprep.subr.mxu0 %v386
        %433 = vmatpush2.msra.mxu0 %v385
        %434 = vmatprep.subr.mxu0 %v384
        %435 = vmatpush2.msra.mxu0 %v383
        %436 = vmatprep.subr.mxu0 %v382
        %437 = vmatpush2.msra.mxu0 %v381
        %438 = vmatprep.subr.mxu0 %v380
        %439 = vmatpush2.msra.mxu0 %v379
        %440 = vmatprep.subr.mxu0 %v378
        %441 = vmatpush2.msra.mxu0 %v377
        %442 = vmatprep.subr.mxu0 %v376
        %443 = vmatpush2.msra.mxu0 %v375
        %444 = vmatprep.subr.mxu0 %v374
        %445 = vmatpush2.msra.mxu0 %v373
        %446 = vmatprep.subr.mxu0 %v372
        %447 = vmatpush2.msra.mxu0 %v371
        %448 = vmatprep.subr.mxu0 %v370
        %449 = vmatpush2.msra.mxu0 %v369
        %450 = vmatprep.subr.mxu0 %v368
        %451 = vmatpush2.msra.mxu0 %v367
        %452 = vmatprep.subr.mxu0 %v366
        %453 = vmatpush2.msra.mxu0 %v365
        %454 = vmatprep.subr.mxu0 %v364
        %455 = vmatpush2.msra.mxu0 %v363
        %456 = vmatprep.subr.mxu0 %v362
        %457 = vmatpush2.msra.mxu0 %v361
        %458 = vmatprep.subr.mxu0 %v360
        %459 = vmatpush2.msra.mxu0 %v359
        %460 = vmatprep.subr.mxu0 %v358
        %461 = vmatpush2.msra.mxu0 %v357
        %462 = vmatprep.subr.mxu0 %v356
        %463 = vmatpush2.msra.mxu0 %v355
        %464 = vmatprep.mubr.f32.mxu0 %v316
        %465 = vmatmul.mubr.f32.gmra.mxu0 %v315
        %v466 = vpop.f32.mrf.mxu0
        %v467 = vadd.f32 %v393, %v466
        %v468 = vpop.f32.mrf.mxu0
        %v469 = vadd.f32 %v397, %v468
        %470 = vmatprep.mubr.f32.mxu0 %v318
        %471 = vmatmul.mubr.f32.gmra.mxu0 %v317
        %v472 = vpop.f32.mrf.mxu0
        %v473 = vadd.f32 %v393, %v472
        %v474 = vpop.f32.mrf.mxu0
        %v475 = vadd.f32 %v397, %v474
        %476 = vmatprep.mubr.f32.mxu0 %v320
        %477 = vmatmul.mubr.f32.gmra.mxu0 %v319
        %v478 = vpop.f32.mrf.mxu0
        %v479 = vadd.f32 %v393, %v478
        %v480 = vpop.f32.mrf.mxu0
        %v481 = vadd.f32 %v397, %v480
        %482 = vmatprep.mubr.f32.mxu0 %v322
        %483 = vmatmul.mubr.f32.gmra.mxu0 %v321
        %v484 = vpop.f32.mrf.mxu0
        %v485 = vadd.f32 %v393, %v484
        %v486 = vpop.f32.mrf.mxu0
        %v487 = vadd.f32 %v397, %v486
        %488 = vdwg.mxu0
        %v489 = vmax.f32 %v467, 0.0
        %v490 = vmax.f32 %v469, 0.0
        %v491 = vmax.f32 %v473, 0.0
        %v492 = vmax.f32 %v475, 0.0
        %v493 = vmax.f32 %v479, 0.0
        %v494 = vmax.f32 %v481, 0.0
        %v495 = vmax.f32 %v485, 0.0
        %v496 = vmax.f32 %v487, 0.0
        %v497 = vld [vmem:[#allocation2 + $0x240] sm:$0xff]
        %v498 = vld [vmem:[#allocation2 + $0x250] sm:$0xff]
        %v499 = vld [vmem:[#allocation2 + $0x260] sm:$0xff]
        %v500 = vld [vmem:[#allocation2 + $0x270] sm:$0xff]
        %v501 = vld [vmem:[#allocation2 + $0x280] sm:$0xff]
        %v502 = vld [vmem:[#allocation2 + $0x290] sm:$0xff]
        %v503 = vld [vmem:[#allocation2 + $0x2a0] sm:$0xff]
        %v504 = vld [vmem:[#allocation2 + $0x2b0] sm:$0xff]
        %v505 = vld [vmem:[#allocation2 + $0x2c0] sm:$0xff]
        %v506 = vld [vmem:[#allocation2 + $0x2d0] sm:$0xff]
        %v507 = vld [vmem:[#allocation2 + $0x2e0] sm:$0xff]
        %v508 = vld [vmem:[#allocation2 + $0x2f0] sm:$0xff]
        %v509 = vld [vmem:[#allocation2 + $0x300] sm:$0xff]
        %v510 = vld [vmem:[#allocation2 + $0x310] sm:$0xff]
        %v511 = vld [vmem:[#allocation2 + $0x320] sm:$0xff]
        %v512 = vld [vmem:[#allocation2 + $0x330] sm:$0xff]
        %v513 = vld [vmem:[#allocation2 + $0x340] sm:$0xff]
        %v514 = vld [vmem:[#allocation2 + $0x350] sm:$0xff]
        %v515 = vld [vmem:[#allocation2 + $0x360] sm:$0xff]
        %v516 = vld [vmem:[#allocation2 + $0x370] sm:$0xff]
        %v517 = vld [vmem:[#allocation2 + $0x380] sm:$0xff]
        %v518 = vld [vmem:[#allocation2 + $0x390] sm:$0xff]
        %v519 = vld [vmem:[#allocation2 + $0x3a0] sm:$0xff]
        %v520 = vld [vmem:[#allocation2 + $0x3b0] sm:$0xff]
        %v521 = vld [vmem:[#allocation2 + $0x3c0] sm:$0xff]
        %v522 = vld [vmem:[#allocation2 + $0x3d0] sm:$0xff]
        %v523 = vld [vmem:[#allocation2 + $0x3e0] sm:$0xff]
        %v524 = vld [vmem:[#allocation2 + $0x3f0] sm:$0xff]
        %v525 = vld [vmem:[#allocation2 + $0x400] sm:$0xff]
        %v526 = vld [vmem:[#allocation2 + $0x410] sm:$0xff]
        %v527 = vld [vmem:[#allocation2 + $0x420] sm:$0xff]
        %v528 = vld [vmem:[#allocation2 + $0x430] sm:$0xff]
        %v529 = vld [vmem:[%s2 + $0x2] ss:$0 sm:$0xff]
        %530 = vmatprep.subr.mxu0 0.0
        %531 = vmatpush1.msra.mxu0 %v512
        %532 = vmatprep.subr.mxu0 0.0
        %533 = vmatpush1.msra.mxu0 %v511
        %534 = vmatprep.subr.mxu0 0.0
        %535 = vmatpush1.msra.mxu0 %v510
        %536 = vmatprep.subr.mxu0 0.0
        %537 = vmatpush1.msra.mxu0 %v509
        %538 = vmatprep.subr.mxu0 0.0
        %539 = vmatpush1.msra.mxu0 %v508
        %540 = vmatprep.subr.mxu0 0.0
        %541 = vmatpush1.msra.mxu0 %v507
        %542 = vmatprep.subr.mxu0 0.0
        %543 = vmatpush1.msra.mxu0 %v506
        %544 = vmatprep.subr.mxu0 0.0
        %545 = vmatpush1.msra.mxu0 %v505
        %546 = vmatprep.subr.mxu0 0.0
        %547 = vmatpush1.msra.mxu0 %v504
        %548 = vmatprep.subr.mxu0 0.0
        %549 = vmatpush1.msra.mxu0 %v503
        %550 = vmatprep.subr.mxu0 0.0
        %551 = vmatpush1.msra.mxu0 %v502
        %552 = vmatprep.subr.mxu0 0.0
        %553 = vmatpush1.msra.mxu0 %v501
        %554 = vmatprep.subr.mxu0 0.0
        %555 = vmatpush1.msra.mxu0 %v500
        %556 = vmatprep.subr.mxu0 0.0
        %557 = vmatpush1.msra.mxu0 %v499
        %558 = vmatprep.subr.mxu0 0.0
        %559 = vmatpush1.msra.mxu0 %v498
        %560 = vmatprep.subr.mxu0 0.0
        %561 = vmatpush1.msra.mxu0 %v497
        %562 = vmatprep.subr.mxu0 0.0
        %563 = vmatpush2.msra.mxu0 %v528
        %564 = vmatprep.subr.mxu0 0.0
        %565 = vmatpush2.msra.mxu0 %v527
        %566 = vmatprep.subr.mxu0 0.0
        %567 = vmatpush2.msra.mxu0 %v526
        %568 = vmatprep.subr.mxu0 0.0
        %569 = vmatpush2.msra.mxu0 %v525
        %570 = vmatprep.subr.mxu0 0.0
        %571 = vmatpush2.msra.mxu0 %v524
        %572 = vmatprep.subr.mxu0 0.0
        %573 = vmatpush2.msra.mxu0 %v523
        %574 = vmatprep.subr.mxu0 0.0
        %575 = vmatpush2.msra.mxu0 %v522
        %576 = vmatprep.subr.mxu0 0.0
        %577 = vmatpush2.msra.mxu0 %v521
        %578 = vmatprep.subr.mxu0 0.0
        %579 = vmatpush2.msra.mxu0 %v520
        %580 = vmatprep.subr.mxu0 0.0
        %581 = vmatpush2.msra.mxu0 %v519
        %582 = vmatprep.subr.mxu0 0.0
        %583 = vmatpush2.msra.mxu0 %v518
        %584 = vmatprep.subr.mxu0 0.0
        %585 = vmatpush2.msra.mxu0 %v517
        %586 = vmatprep.subr.mxu0 0.0
        %587 = vmatpush2.msra.mxu0 %v516
        %588 = vmatprep.subr.mxu0 0.0
        %589 = vmatpush2.msra.mxu0 %v515
        %590 = vmatprep.subr.mxu0 0.0
        %591 = vmatpush2.msra.mxu0 %v514
        %592 = vmatprep.subr.mxu0 0.0
        %593 = vmatpush2.msra.mxu0 %v513
        %594 = vmatprep.mubr.f32.mxu0 %v490
        %595 = vmatmul.mubr.f32.gmra.mxu0 %v489
        %v596 = vpop.f32.mrf.mxu0
        %v597 = vadd.f32 %v529, %v596
        %v598 = vpop.f32.mrf.mxu0
        %599 = vmatprep.mubr.f32.mxu0 %v492
        %600 = vmatmul.mubr.f32.gmra.mxu0 %v491
        %v601 = vpop.f32.mrf.mxu0
        %v602 = vadd.f32 %v529, %v601
        %v603 = vpop.f32.mrf.mxu0
        %604 = vmatprep.mubr.f32.mxu0 %v494
        %605 = vmatmul.mubr.f32.gmra.mxu0 %v493
        %v606 = vpop.f32.mrf.mxu0
        %v607 = vadd.f32 %v529, %v606
        %v608 = vpop.f32.mrf.mxu0
        %609 = vmatprep.mubr.f32.mxu0 %v496
        %610 = vmatmul.mubr.f32.gmra.mxu0 %v495
        %v611 = vpop.f32.mrf.mxu0
        %v612 = vadd.f32 %v529, %v611
        %v613 = vpop.f32.mrf.mxu0
        %614 = vdwg.mxu0
        %v615 = vmax.f32 %v597, 0.0
        %v616 = vmax.f32 %v602, 0.0
        %v617 = vmax.f32 %v607, 0.0
        %v618 = vmax.f32 %v612, 0.0
        %v619 = vld [vmem:[#allocation2 + $0x440] sm:$0xff]
        %v620 = vld [vmem:[#allocation2 + $0x450] sm:$0xff]
        %v621 = vld [vmem:[#allocation2 + $0x460] sm:$0xff]
        %v622 = vld [vmem:[#allocation2 + $0x470] sm:$0xff]
        %v623 = vld [vmem:[#allocation2 + $0x480] sm:$0xff]
        %v624 = vld [vmem:[#allocation2 + $0x490] sm:$0xff]
        %v625 = vld [vmem:[#allocation2 + $0x4a0] sm:$0xff]
        %v626 = vld [vmem:[#allocation2 + $0x4b0] sm:$0xff]
        %v627 = vld [vmem:[#allocation2 + $0x4c0] sm:$0xff]
        %v628 = vld [vmem:[#allocation2 + $0x4d0] sm:$0xff]
        %v629 = vld [vmem:[#allocation2 + $0x4e0] sm:$0xff]
        %v630 = vld [vmem:[#allocation2 + $0x4f0] sm:$0xff]
        %v631 = vld [vmem:[#allocation2 + $0x500] sm:$0xff]
        %v632 = vld [vmem:[#allocation2 + $0x510] sm:$0xff]
        %v633 = vld [vmem:[#allocation2 + $0x520] sm:$0xff]
        %v634 = vld [vmem:[#allocation2 + $0x530] sm:$0xff]
        %v635 = vld [vmem:[%s2 + $0x3] ss:$0 sm:$0xff]
        %636 = vmatprep.subr.mxu0 0.0
        %637 = vmatpush1.msra.mxu0 %v634
        %638 = vmatprep.subr.mxu0 0.0
        %639 = vmatpush1.msra.mxu0 %v633
        %640 = vmatprep.subr.mxu0 0.0
        %641 = vmatpush1.msra.mxu0 %v632
        %642 = vmatprep.subr.mxu0 0.0
        %643 = vmatpush1.msra.mxu0 %v631
        %644 = vmatprep.subr.mxu0 0.0
        %645 = vmatpush1.msra.mxu0 %v630
        %646 = vmatprep.subr.mxu0 0.0
        %647 = vmatpush1.msra.mxu0 %v629
        %648 = vmatprep.subr.mxu0 0.0
        %649 = vmatpush1.msra.mxu0 %v628
        %650 = vmatprep.subr.mxu0 0.0
        %651 = vmatpush1.msra.mxu0 %v627
        %652 = vmatprep.subr.mxu0 0.0
        %653 = vmatpush1.msra.mxu0 %v626
        %654 = vmatprep.subr.mxu0 0.0
        %655 = vmatpush1.msra.mxu0 %v625
        %656 = vmatprep.subr.mxu0 0.0
        %657 = vmatpush1.msra.mxu0 %v624
        %658 = vmatprep.subr.mxu0 0.0
        %659 = vmatpush1.msra.mxu0 %v623
        %660 = vmatprep.subr.mxu0 0.0
        %661 = vmatpush1.msra.mxu0 %v622
        %662 = vmatprep.subr.mxu0 0.0
        %663 = vmatpush1.msra.mxu0 %v621
        %664 = vmatprep.subr.mxu0 0.0
        %665 = vmatpush1.msra.mxu0 %v620
        %666 = vmatprep.subr.mxu0 0.0
        %667 = vmatpush1.msra.mxu0 %v619
        %668 = vmatprep.subr.mxu0 0.0
        %669 = vmatpush2.msra.mxu0 0.0
        %670 = vmatprep.subr.mxu0 0.0
        %671 = vmatpush2.msra.mxu0 0.0
        %672 = vmatprep.subr.mxu0 0.0
        %673 = vmatpush2.msra.mxu0 0.0
        %674 = vmatprep.subr.mxu0 0.0
        %675 = vmatpush2.msra.mxu0 0.0
        %676 = vmatprep.subr.mxu0 0.0
        %677 = vmatpush2.msra.mxu0 0.0
        %678 = vmatprep.subr.mxu0 0.0
        %679 = vmatpush2.msra.mxu0 0.0
        %680 = vmatprep.subr.mxu0 0.0
        %681 = vmatpush2.msra.mxu0 0.0
        %682 = vmatprep.subr.mxu0 0.0
        %683 = vmatpush2.msra.mxu0 0.0
        %684 = vmatprep.subr.mxu0 0.0
        %685 = vmatpush2.msra.mxu0 0.0
        %686 = vmatprep.subr.mxu0 0.0
        %687 = vmatpush2.msra.mxu0 0.0
        %688 = vmatprep.subr.mxu0 0.0
        %689 = vmatpush2.msra.mxu0 0.0
        %690 = vmatprep.subr.mxu0 0.0
        %691 = vmatpush2.msra.mxu0 0.0
        %692 = vmatprep.subr.mxu0 0.0
        %693 = vmatpush2.msra.mxu0 0.0
        %694 = vmatprep.subr.mxu0 0.0
        %695 = vmatpush2.msra.mxu0 0.0
        %696 = vmatprep.subr.mxu0 0.0
        %697 = vmatpush2.msra.mxu0 0.0
        %698 = vmatprep.subr.mxu0 0.0
        %699 = vmatpush2.msra.mxu0 0.0
        %700 = vmatprep.mubr.f32.mxu0 0.0
        %701 = vmatmul.mubr.f32.gmra.mxu0 %v615
        %v702 = vpop.f32.mrf.mxu0
        %v703 = vadd.f32 %v635, %v702
        %v704 = vpop.f32.mrf.mxu0
        %705 = vmatprep.mubr.f32.mxu0 0.0
        %706 = vmatmul.mubr.f32.gmra.mxu0 %v616
        %v707 = vpop.f32.mrf.mxu0
        %v708 = vadd.f32 %v635, %v707
        %v709 = vpop.f32.mrf.mxu0
        %710 = vmatprep.mubr.f32.mxu0 0.0
        %711 = vmatmul.mubr.f32.gmra.mxu0 %v617
        %v712 = vpop.f32.mrf.mxu0
        %v713 = vadd.f32 %v635, %v712
        %v714 = vpop.f32.mrf.mxu0
        %715 = vmatprep.mubr.f32.mxu0 0.0
        %716 = vmatmul.mubr.f32.gmra.mxu0 %v618
        %v717 = vpop.f32.mrf.mxu0
        %v718 = vadd.f32 %v635, %v717
        %v719 = vpop.f32.mrf.mxu0
        %720 = vdwg.mxu0
        %v721 = vmax.f32 %v703, 0.0
        %v722 = vmax.f32 %v708, 0.0
        %v723 = vmax.f32 %v713, 0.0
        %v724 = vmax.f32 %v718, 0.0
        %v725 = vld [vmem:[%s2 + $0x4] ss:$0 sm:$0xff]
        %v726 = vmul.f32 %v721, %v725
        %v727 = vmul.f32 %v722, %v725
        %v728 = vmul.f32 %v723, %v725
        %v729 = vmul.f32 %v724, %v725
        %730 = vadd.xlane.f32.xlu0 %v726
        %v731 = vpop.xlane.xlu0 %730
        %732 = vadd.xlane.f32.xlu0 %v727
        %v733 = vpop.xlane.xlu0 %732
        %734 = vadd.xlane.f32.xlu0 %v728
        %v735 = vpop.xlane.xlu0 %734
        %736 = vadd.xlane.f32.xlu0 %v729
        %v737 = vpop.xlane.xlu0 %736
        %v738 = vld [vmem:[%s2 + $0x5] ss:$0 sm:$0xff]
        %v739 = vadd.f32 %v731, %v738
        %v740 = vadd.f32 %v733, %v738
        %v741 = vadd.f32 %v735, %v738
        %v742 = vadd.f32 %v737, %v738
        %vm743 = vcmask 7168
        %744 = vst.msk [vmem:[%s187] sm:$0xff] %vm743, %v739
        %745 = vst.msk [vmem:[%s187 + $0x8] sm:$0xff] %vm743, %v740
        %746 = vst.msk [vmem:[%s187 + $0x10] sm:$0xff] %vm743, %v741
        %747 = vst.msk [vmem:[%s187 + $0x18] sm:$0xff] %vm743, %v742
        %s748 = smul.u32 4, %s15
        %p749 = scmp.lt.s32.totalorder %s748, 11
        %s750 = scalar_select %p749, %s748, 11
        %s751 = smul.addr %s750, 8
        %s752 = scalar_lea.vmem %s3, %s751
        // Predicated region
        $region37: #{tpu_custom_call.1} parent=31 // pred_check
          %p753 = pneg %p101
        $region38: #{tpu_custom_call.1} parent=31 // pred_check_branch
          %755 = sbr.rel (%p753) target = $region40
        $region39: #{tpu_custom_call.1} parent=31 // pred_region
          %s756 = smul.u32 4, %s15
        $region40: #{tpu_custom_call.1} parent=31 // pred_fallthru
          _
      $region32: #{tpu_custom_call.1} parent=5 // pred_fallthru
        _
      %p757 = scmp.le.s32.totalorder 2, %s10
      // Predicated region
      $region41: #{tpu_custom_call.1} parent=5 // pred_check
        %p758 = pneg %p757
      $region42: #{tpu_custom_call.1} parent=5 // pred_check_branch
        %760 = sbr.rel (%p758) target = $region44
      $region43: #{tpu_custom_call.1} parent=5 // pred_region
        %s761 = ssub.s32 %s10, 2
        // Predicated region
        $region45: #{tpu_custom_call.1} parent=43 // pred_check
          %p762 = pneg %p107
        $region46: #{tpu_custom_call.1} parent=43 // pred_check_branch
          %764 = sbr.rel (%p762) target = $region48
        $region47: #{tpu_custom_call.1} parent=43 // pred_region
          %s765 = smul.u32 4, %s16
          %p766 = scmp.lt.s32.totalorder %s765, 11
          %s767 = scalar_select %p766, %s765, 11
          %s768 = smul.addr %s767, 8
          %s769 = scalar_lea.vmem %s3, %s768
        $region48: #{tpu_custom_call.1} parent=43 // pred_fallthru
          _
      $region44: #{tpu_custom_call.1} parent=5 // pred_fallthru
        _
    $region6: #{tpu_custom_call.1} parent=1 // loop_footer
      %s14 = sadd.s32 1, %s10
    $region7: #{tpu_custom_call.1} parent=1 // loop_footer_branch
      %9 = sbr.rel target = $region3
    $region8: #{tpu_custom_call.1} parent=1 // loop_exit
      _
    %770 = vsyncpa [#allocation3], 1
    %s771 = scalar_lea.sflag [#allocation3], 1
    %772 = vsyncpa %s771, 1

</llo_original>
